<compile_context>
chip_gen: v5e
topology: v5e:2x2
jax: 0.10.0
libtpu: 0.0.40
codegen_flags: <defaults>
</compile_context>

<pallas_src>
import math

import numpy as np
import jax
import jax.numpy as jnp
from jax import lax
from jax.experimental import pallas as pl
from jax.experimental.pallas import tpu as pltpu


def _setup_kernel(k):
    k = np.asarray(k, dtype=np.float32)
    if k.ndim == 1:
        k = np.outer(k, k)
    k /= np.sum(k)
    assert k.ndim == 2 and k.shape[0] == k.shape[1]
    return k


# --------------------------- Pallas kernel -----------------------------------

def _fir_resize_kernel(src_ref, mv_ref, mw_ref, out_ref):
    """Fused F.conv2d(1x1x4x4 FIR, valid) + F.interpolate(mode='nearest').

    src_ref: (TB, Hp, Wp)  batch-tile of the pre-conv tensor
    mv_ref : (TH, Hp)      vertical FIR taps folded with the nearest row-resize
    mw_ref : (Wp, OW)      horizontal FIR taps folded with the nearest col-resize
    out_ref: (TB, TH, OW)

    out[b, h2, w2] = sum_{ky,kx} fir[ky,kx] * src[b, hs[h2]+ky, ws[w2]+kx]
                   = (MV @ src[b] @ MW)[h2, w2]
    Both contractions run on the MXU with W on the lane axis.
    """
    mv = mv_ref[...]          # hoisted: loaded once per grid step, reused for all slices
    mw = mw_ref[...]

    def body(b, carry):
        t = jnp.dot(mv, src_ref[b], preferred_element_type=jnp.float32)        # (TH, Wp)
        out_ref[b] = jnp.dot(t, mw, preferred_element_type=jnp.float32
                             ).astype(out_ref.dtype)                           # (TH, OW)
        return carry

    # TB is small and static -> fully unrolled for LLO scheduler visibility.
    lax.fori_loop(0, src_ref.shape[0], body, 0, unroll=True)


def _pick_row_tile(oh, max_tile=256):
    """Largest output-row tile <= max_tile that divides oh (multiple of 8 when partial)."""
    if oh <= max_tile:
        return oh
    t = (max_tile // 8) * 8
    while t >= 8:
        if oh % t == 0:
            return t
        t -= 8
    return oh


def _pick_batch_tile(b, hp, wp, th, ow, budget_bytes=8 * 1024 * 1024):
    """Largest batch tile dividing b whose double-buffered VMEM blocks fit the budget."""
    fixed = (th * hp + wp * ow) * 4 * 2           # MV tile + MW, double-buffered
    per_slice = (hp * wp + th * ow) * 4 * 2       # src + out tiles, double-buffered
    for cand in range(b, 0, -1):
        if b % cand == 0 and fixed + cand * per_slice <= budget_bytes:
            return cand
    return 1


def fir_resize_pallas(y, mv, mw):
    """y: (B, Hp, Wp) f32; mv: (OH, Hp) f32; mw: (Wp, OW) f32 -> (B, OH, OW) f32."""
    B, Hp, Wp = y.shape
    OH, OW = mv.shape[0], mw.shape[1]
    th = _pick_row_tile(OH)
    tb = _pick_batch_tile(B, Hp, Wp, th, OW)
    grid = (B // tb, OH // th)
    return pl.pallas_call(
        _fir_resize_kernel,
        out_shape=jax.ShapeDtypeStruct((B, OH, OW), jnp.float32),
        grid_spec=pltpu.PrefetchScalarGridSpec(
            num_scalar_prefetch=0,
            grid=grid,
            in_specs=[
                pl.BlockSpec((tb, Hp, Wp), lambda bi, ri: (bi, 0, 0)),  # batch tile of input
                pl.BlockSpec((th, Hp),     lambda bi, ri: (ri, 0)),     # row tile of MV
                pl.BlockSpec((Wp, OW),     lambda bi, ri: (0, 0)),      # MW reused every step
            ],
            out_specs=pl.BlockSpec((tb, th, OW), lambda bi, ri: (bi, ri, 0)),
        ),
        compiler_params=pltpu.CompilerParams(
            dimension_semantics=("parallel", "parallel")),
    )(y, mv, mw)


# --------------------------- module -------------------------------------------

class Upsample2d:
    def __init__(self, k=(1, 3, 3, 1), factor=2, down=1, gain=1):
        assert isinstance(factor, int) and factor >= 1, \
            'factor must be larger than 1! (default: 2)'
        self.gain = gain
        self.factor = factor
        self.down = down                                    # stored, unused (as in reference)

        self.k2d = _setup_kernel(k) * (gain * factor ** 2)  # (kh, kw)
        # Reference: self.k = FloatTensor(k2d).unsqueeze(0).unsqueeze(0) -> shape (1,1,kh,kw)
        # and p is computed from THAT tensor's shape[0] (== 1).  Quirk preserved.
        k4d_shape0 = 1
        self.p = k4d_shape0 - factor                         # = -1 for factor=2
        self.padx0 = self.pady0 = (self.p + 1) // 2 + factor - 1   # = 1
        self.padx1 = self.pady1 = self.p // 2                      # = -1
        self.kernelH, self.kernelW = self.k2d.shape

        u = np.asarray(k, dtype=np.float32)
        if u.ndim != 1:
            # TODO(synk): non-separable 2-D FIR kernels would need the full tap matrix
            # folded into per-tap selection matrices; the module default k=[1,3,3,1] is 1-D.
            raise NotImplementedError("only 1-D (separable) FIR kernels are supported")
        # separable factor: outer(k1d, k1d) == k2d exactly (up to fp rounding)
        self.k1d = (u / np.sum(u) * (factor * math.sqrt(gain))).astype(np.float32)
        self._mat_cache = {}                                  # (H, W) -> (mv, mw, OH, OW)

    # ---- layout glue: literal mirror of the reference up to (and incl.) the pre-conv tensor
    def _pre_conv(self, x):
        N, C, H, W = x.shape
        f = self.factor
        B = N * C

        y = x.reshape(B, H, W, 1)
        y = y.reshape(B, H, 1, W, 1, 1)
        # F.pad(y, (0,0, f-1,0, 0,0, f-1,0, 0,0, 0,0)): zeros BEFORE along dims 2 and 4
        y = jnp.pad(y, ((0, 0), (0, 0), (f - 1, 0), (0, 0), (f - 1, 0), (0, 0)))
        y = y.reshape(B, 1, H * f, W * f)

        # F.pad(y, (0,0, max(pady0,0),max(pady1,0), max(padx0,0),max(padx1,0), 0,0)):
        # hits dim 2 (H axis) with pady and dim 1 (the singleton) with padx.  Quirk preserved.
        y = jnp.pad(y, ((0, 0),
                        (max(self.padx0, 0), max(self.padx1, 0)),
                        (max(self.pady0, 0), max(self.pady1, 0)),
                        (0, 0)))
        # crop (note: dim 1 uses pady, dim 2 uses padx — exactly as the reference)
        y = y[:, max(-self.pady0, 0): y.shape[1] - max(-self.pady1, 0),
                 max(-self.padx0, 0): y.shape[2] - max(-self.padx1, 0), :]

        Hp = H * f + self.pady0 + self.pady1
        Wp = W * f + self.padx0 + self.padx1
        y = jnp.transpose(y, (0, 3, 1, 2)).reshape(-1, 1, Hp, Wp)

        Ho = Hp - self.kernelH + 1
        Wo = Wp - self.kernelW + 1
        # reference: post-conv tensor is (B', 1, Ho, Wo); interpolation triggers when
        # inH*factor != its dim-1 size (== 1).
        if H * f != 1:
            OH, OW = H * f, W * f
            hs = np.minimum(np.floor(np.arange(OH) * (Ho / OH)), Ho - 1).astype(np.int32)
            ws = np.minimum(np.floor(np.arange(OW) * (Wo / OW)), Wo - 1).astype(np.int32)
        else:
            OH, OW = Ho, Wo
            hs = np.arange(OH, dtype=np.int32)
            ws = np.arange(OW, dtype=np.int32)
        return y.reshape(-1, Hp, Wp), (OH, OW, hs, ws)

    def _fold_matrices(self, H, W, Hp, Wp, OH, OW, hs, ws):
        """Constant matrices fusing FIR taps with the static nearest-resize selection."""
        key = (H, W)
        if key not in self._mat_cache:
            mv = np.zeros((OH, Hp), np.float32)
            for h2 in range(OH):
                mv[h2, int(hs[h2]): int(hs[h2]) + self.kernelH] = self.k1d
            mw = np.zeros((Wp, OW), np.float32)
            for w2 in range(OW):
                mw[int(ws[w2]): int(ws[w2]) + self.kernelW, w2] = self.k1d
            self._mat_cache[key] = (jnp.asarray(mv), jnp.asarray(mw))
        return self._mat_cache[key]

    # ---- Pallas forward
    def __call__(self, x):
        N, C, H, W = x.shape
        y3, (OH, OW, hs, ws) = self._pre_conv(x.astype(jnp.float32))
        _, Hp, Wp = y3.shape
        mv, mw = self._fold_matrices(H, W, Hp, Wp, OH, OW, hs, ws)

        out = fir_resize_pallas(y3, mv, mw)                   # (B', OH, OW)
        # reference tail: permute(0,2,3,1) + reshape(-1, C, H*f, W*f); channel dim is 1,
        # so this is a plain reshape of B' = N*C back into (N, C).
        return out.reshape(-1, C, OH, OW)

    # ---- pure-JAX literal mirror (lax.conv + gathers) used only to cross-check the kernel
    def reference(self, x):
        N, C, H, W = x.shape
        y3, (OH, OW, hs, ws) = self._pre_conv(x.astype(jnp.float32))
        fir = jnp.asarray(self.k2d, jnp.float32)[None, None]              # (1,1,kh,kw)
        z = jax.lax.conv_general_dilated(
            y3[:, None], fir, window_strides=(1, 1), padding='VALID',
            dimension_numbers=('NCHW', 'OIHW', 'NCHW'))                   # (B',1,Ho,Wo)
        z = z[:, :, hs, :][:, :, :, ws]                                   # nearest interp
        z = jnp.transpose(z, (0, 2, 3, 1))
        return z.reshape(-1, C, OH, OW)


# --------------------------- main ---------------------------------------------

if __name__ == "__main__":
    N, C, H, W = 2, 4, 16, 16
    key = jax.random.PRNGKey(0)
    x = jax.random.normal(key, (N, C, H, W), jnp.float32)

    up = Upsample2d()                          # defaults: k=[1,3,3,1], factor=2, gain=1
    out = jax.block_until_ready(jax.jit(lambda t: up(t))(x))

    assert out.shape == (N, C, H * 2, W * 2), out.shape
    assert bool(jnp.all(jnp.isfinite(out)))

    # 1) module-level check against a literal pure-JAX mirror of the reference forward
    ref = jax.block_until_ready(up.reference(x))
    assert ref.shape == out.shape
    assert bool(jnp.allclose(out, ref, atol=1e-5, rtol=1e-5)), \
        float(jnp.max(jnp.abs(out - ref)))

    # 2) kernel-level check on dense, non-zero data so the MXU path is genuinely exercised
    #    (the reference module's pad/crop quirk makes its own pre-conv tensor all zeros).
    kb, kh, kw, oh, ow = 8, 32, 32, 32, 32
    k0, k1, k2 = jax.random.split(key, 3)
    yr = jax.random.normal(k0, (kb, kh, kw), jnp.float32)
    mvr = jax.random.normal(k1, (oh, kh), jnp.float32)
    mwr = jax.random.normal(k2, (kw, ow), jnp.float32)
    got = jax.block_until_ready(fir_resize_pallas(yr, mvr, mwr))
    want = jnp.einsum('vh,bhw,wo->bvo', mvr, yr, mwr,
                      precision=jax.lax.Precision.HIGHEST)
    assert got.shape == want.shape
    assert bool(jnp.allclose(got, want, atol=2e-2, rtol=2e-2)), \
        float(jnp.max(jnp.abs(got - want)))

    print("KERNEL_OK")
</pallas_src>

<mosaic_0001>
module attributes {stable_mosaic.version = 11 : i64} {
  func.func @_fir_resize_kernel(%arg0: i32, %arg1: i32, %arg2: memref<8x32x32xf32, #tpu.memory_space<vmem>>, %arg3: memref<32x32xf32, #tpu.memory_space<vmem>>, %arg4: memref<32x32xf32, #tpu.memory_space<vmem>>, %arg5: memref<8x32x32xf32, #tpu.memory_space<vmem>>) attributes {dimension_semantics = [#tpu.dimension_semantics<parallel>, #tpu.dimension_semantics<parallel>], iteration_bounds = array<i64: 1, 1>, scalar_prefetch = 0 : i64, scratch_operands = 0 : i64, tpu.core_type = #tpu.core_type<tc>, window_params = [{transform_indices = @transform_0, window_bounds = array<i64: 8, 32, 32>}, {transform_indices = @transform_1, window_bounds = array<i64: 32, 32>}, {pipeline_mode = #tpu.pipeline_mode<synchronous>, transform_indices = @transform_2, window_bounds = array<i64: 32, 32>}, {transform_indices = @transform_3, window_bounds = array<i64: 8, 32, 32>}]} {
    %c0 = arith.constant 0 : index
    %c0_0 = arith.constant 0 : index
    %0 = vector.load %arg3[%c0, %c0_0] : memref<32x32xf32, #tpu.memory_space<vmem>>, vector<32x32xf32>
    %c0_1 = arith.constant 0 : index
    %c0_2 = arith.constant 0 : index
    %1 = vector.load %arg4[%c0_1, %c0_2] : memref<32x32xf32, #tpu.memory_space<vmem>>, vector<32x32xf32>
    %c0_i32 = arith.constant 0 : i32
    %2 = arith.index_cast %c0_i32 : i32 to index
    %c0_3 = arith.constant 0 : index
    %c0_4 = arith.constant 0 : index
    %3 = vector.load %arg2[%2, %c0_3, %c0_4] : memref<8x32x32xf32, #tpu.memory_space<vmem>>, vector<1x32x32xf32>
    %4 = vector.shape_cast %3 : vector<1x32x32xf32> to vector<32x32xf32>
    %cst = arith.constant dense<0.000000e+00> : vector<32x32xf32>
    %5 = tpu.matmul %0, %4, %cst {dimension_numbers = #tpu.dot_dimension_numbers<[1], [0], [0], [1], [0, 0, 1, 1], [], []>} : vector<32x32xf32>, vector<32x32xf32>, vector<32x32xf32> -> vector<32x32xf32>
    %cst_5 = arith.constant dense<0.000000e+00> : vector<32x32xf32>
    %6 = tpu.matmul %5, %1, %cst_5 {dimension_numbers = #tpu.dot_dimension_numbers<[1], [0], [0], [1], [0, 0, 1, 1], [], []>} : vector<32x32xf32>, vector<32x32xf32>, vector<32x32xf32> -> vector<32x32xf32>
    %7 = arith.index_cast %c0_i32 : i32 to index
    %c0_6 = arith.constant 0 : index
    %c0_7 = arith.constant 0 : index
    %8 = vector.load %arg5[%7, %c0_6, %c0_7] : memref<8x32x32xf32, #tpu.memory_space<vmem>>, vector<1x32x32xf32>
    %9 = vector.shape_cast %8 : vector<1x32x32xf32> to vector<32x32xf32>
    %10 = vector.shape_cast %6 : vector<32x32xf32> to vector<1x32x32xf32>
    tpu.vector_store %arg5[%7, %c0_6, %c0_7], %10 {strides = array<i32>} : memref<8x32x32xf32, #tpu.memory_space<vmem>>, vector<1x32x32xf32>,
    %c1_i32 = arith.constant 1 : i32
    %11 = arith.index_cast %c1_i32 : i32 to index
    %c0_8 = arith.constant 0 : index
    %c0_9 = arith.constant 0 : index
    %12 = vector.load %arg2[%11, %c0_8, %c0_9] : memref<8x32x32xf32, #tpu.memory_space<vmem>>, vector<1x32x32xf32>
    %13 = vector.shape_cast %12 : vector<1x32x32xf32> to vector<32x32xf32>
    %cst_10 = arith.constant dense<0.000000e+00> : vector<32x32xf32>
    %14 = tpu.matmul %0, %13, %cst_10 {dimension_numbers = #tpu.dot_dimension_numbers<[1], [0], [0], [1], [0, 0, 1, 1], [], []>} : vector<32x32xf32>, vector<32x32xf32>, vector<32x32xf32> -> vector<32x32xf32>
    %cst_11 = arith.constant dense<0.000000e+00> : vector<32x32xf32>
    %15 = tpu.matmul %14, %1, %cst_11 {dimension_numbers = #tpu.dot_dimension_numbers<[1], [0], [0], [1], [0, 0, 1, 1], [], []>} : vector<32x32xf32>, vector<32x32xf32>, vector<32x32xf32> -> vector<32x32xf32>
    %16 = arith.index_cast %c1_i32 : i32 to index
    %c0_12 = arith.constant 0 : index
    %c0_13 = arith.constant 0 : index
    %17 = vector.load %arg5[%16, %c0_12, %c0_13] : memref<8x32x32xf32, #tpu.memory_space<vmem>>, vector<1x32x32xf32>
    %18 = vector.shape_cast %17 : vector<1x32x32xf32> to vector<32x32xf32>
    %19 = vector.shape_cast %15 : vector<32x32xf32> to vector<1x32x32xf32>
    tpu.vector_store %arg5[%16, %c0_12, %c0_13], %19 {strides = array<i32>} : memref<8x32x32xf32, #tpu.memory_space<vmem>>, vector<1x32x32xf32>,
    %c2_i32 = arith.constant 2 : i32
    %20 = arith.index_cast %c2_i32 : i32 to index
    %c0_14 = arith.constant 0 : index
    %c0_15 = arith.constant 0 : index
    %21 = vector.load %arg2[%20, %c0_14, %c0_15] : memref<8x32x32xf32, #tpu.memory_space<vmem>>, vector<1x32x32xf32>
    %22 = vector.shape_cast %21 : vector<1x32x32xf32> to vector<32x32xf32>
    %cst_16 = arith.constant dense<0.000000e+00> : vector<32x32xf32>
    %23 = tpu.matmul %0, %22, %cst_16 {dimension_numbers = #tpu.dot_dimension_numbers<[1], [0], [0], [1], [0, 0, 1, 1], [], []>} : vector<32x32xf32>, vector<32x32xf32>, vector<32x32xf32> -> vector<32x32xf32>
    %cst_17 = arith.constant dense<0.000000e+00> : vector<32x32xf32>
    %24 = tpu.matmul %23, %1, %cst_17 {dimension_numbers = #tpu.dot_dimension_numbers<[1], [0], [0], [1], [0, 0, 1, 1], [], []>} : vector<32x32xf32>, vector<32x32xf32>, vector<32x32xf32> -> vector<32x32xf32>
    %25 = arith.index_cast %c2_i32 : i32 to index
    %c0_18 = arith.constant 0 : index
    %c0_19 = arith.constant 0 : index
    %26 = vector.load %arg5[%25, %c0_18, %c0_19] : memref<8x32x32xf32, #tpu.memory_space<vmem>>, vector<1x32x32xf32>
    %27 = vector.shape_cast %26 : vector<1x32x32xf32> to vector<32x32xf32>
    %28 = vector.shape_cast %24 : vector<32x32xf32> to vector<1x32x32xf32>
    tpu.vector_store %arg5[%25, %c0_18, %c0_19], %28 {strides = array<i32>} : memref<8x32x32xf32, #tpu.memory_space<vmem>>, vector<1x32x32xf32>,
    %c3_i32 = arith.constant 3 : i32
    %29 = arith.index_cast %c3_i32 : i32 to index
    %c0_20 = arith.constant 0 : index
    %c0_21 = arith.constant 0 : index
    %30 = vector.load %arg2[%29, %c0_20, %c0_21] : memref<8x32x32xf32, #tpu.memory_space<vmem>>, vector<1x32x32xf32>
    %31 = vector.shape_cast %30 : vector<1x32x32xf32> to vector<32x32xf32>
    %cst_22 = arith.constant dense<0.000000e+00> : vector<32x32xf32>
    %32 = tpu.matmul %0, %31, %cst_22 {dimension_numbers = #tpu.dot_dimension_numbers<[1], [0], [0], [1], [0, 0, 1, 1], [], []>} : vector<32x32xf32>, vector<32x32xf32>, vector<32x32xf32> -> vector<32x32xf32>
    %cst_23 = arith.constant dense<0.000000e+00> : vector<32x32xf32>
    %33 = tpu.matmul %32, %1, %cst_23 {dimension_numbers = #tpu.dot_dimension_numbers<[1], [0], [0], [1], [0, 0, 1, 1], [], []>} : vector<32x32xf32>, vector<32x32xf32>, vector<32x32xf32> -> vector<32x32xf32>
    %34 = arith.index_cast %c3_i32 : i32 to index
    %c0_24 = arith.constant 0 : index
    %c0_25 = arith.constant 0 : index
    %35 = vector.load %arg5[%34, %c0_24, %c0_25] : memref<8x32x32xf32, #tpu.memory_space<vmem>>, vector<1x32x32xf32>
    %36 = vector.shape_cast %35 : vector<1x32x32xf32> to vector<32x32xf32>
    %37 = vector.shape_cast %33 : vector<32x32xf32> to vector<1x32x32xf32>
    tpu.vector_store %arg5[%34, %c0_24, %c0_25], %37 {strides = array<i32>} : memref<8x32x32xf32, #tpu.memory_space<vmem>>, vector<1x32x32xf32>,
    %c4_i32 = arith.constant 4 : i32
    %38 = arith.index_cast %c4_i32 : i32 to index
    %c0_26 = arith.constant 0 : index
    %c0_27 = arith.constant 0 : index
    %39 = vector.load %arg2[%38, %c0_26, %c0_27] : memref<8x32x32xf32, #tpu.memory_space<vmem>>, vector<1x32x32xf32>
    %40 = vector.shape_cast %39 : vector<1x32x32xf32> to vector<32x32xf32>
    %cst_28 = arith.constant dense<0.000000e+00> : vector<32x32xf32>
    %41 = tpu.matmul %0, %40, %cst_28 {dimension_numbers = #tpu.dot_dimension_numbers<[1], [0], [0], [1], [0, 0, 1, 1], [], []>} : vector<32x32xf32>, vector<32x32xf32>, vector<32x32xf32> -> vector<32x32xf32>
    %cst_29 = arith.constant dense<0.000000e+00> : vector<32x32xf32>
    %42 = tpu.matmul %41, %1, %cst_29 {dimension_numbers = #tpu.dot_dimension_numbers<[1], [0], [0], [1], [0, 0, 1, 1], [], []>} : vector<32x32xf32>, vector<32x32xf32>, vector<32x32xf32> -> vector<32x32xf32>
    %43 = arith.index_cast %c4_i32 : i32 to index
    %c0_30 = arith.constant 0 : index
    %c0_31 = arith.constant 0 : index
    %44 = vector.load %arg5[%43, %c0_30, %c0_31] : memref<8x32x32xf32, #tpu.memory_space<vmem>>, vector<1x32x32xf32>
    %45 = vector.shape_cast %44 : vector<1x32x32xf32> to vector<32x32xf32>
    %46 = vector.shape_cast %42 : vector<32x32xf32> to vector<1x32x32xf32>
    tpu.vector_store %arg5[%43, %c0_30, %c0_31], %46 {strides = array<i32>} : memref<8x32x32xf32, #tpu.memory_space<vmem>>, vector<1x32x32xf32>,
    %c5_i32 = arith.constant 5 : i32
    %47 = arith.index_cast %c5_i32 : i32 to index
    %c0_32 = arith.constant 0 : index
    %c0_33 = arith.constant 0 : index
    %48 = vector.load %arg2[%47, %c0_32, %c0_33] : memref<8x32x32xf32, #tpu.memory_space<vmem>>, vector<1x32x32xf32>
    %49 = vector.shape_cast %48 : vector<1x32x32xf32> to vector<32x32xf32>
    %cst_34 = arith.constant dense<0.000000e+00> : vector<32x32xf32>
    %50 = tpu.matmul %0, %49, %cst_34 {dimension_numbers = #tpu.dot_dimension_numbers<[1], [0], [0], [1], [0, 0, 1, 1], [], []>} : vector<32x32xf32>, vector<32x32xf32>, vector<32x32xf32> -> vector<32x32xf32>
    %cst_35 = arith.constant dense<0.000000e+00> : vector<32x32xf32>
    %51 = tpu.matmul %50, %1, %cst_35 {dimension_numbers = #tpu.dot_dimension_numbers<[1], [0], [0], [1], [0, 0, 1, 1], [], []>} : vector<32x32xf32>, vector<32x32xf32>, vector<32x32xf32> -> vector<32x32xf32>
    %52 = arith.index_cast %c5_i32 : i32 to index
    %c0_36 = arith.constant 0 : index
    %c0_37 = arith.constant 0 : index
    %53 = vector.load %arg5[%52, %c0_36, %c0_37] : memref<8x32x32xf32, #tpu.memory_space<vmem>>, vector<1x32x32xf32>
    %54 = vector.shape_cast %53 : vector<1x32x32xf32> to vector<32x32xf32>
    %55 = vector.shape_cast %51 : vector<32x32xf32> to vector<1x32x32xf32>
    tpu.vector_store %arg5[%52, %c0_36, %c0_37], %55 {strides = array<i32>} : memref<8x32x32xf32, #tpu.memory_space<vmem>>, vector<1x32x32xf32>,
    %c6_i32 = arith.constant 6 : i32
    %56 = arith.index_cast %c6_i32 : i32 to index
    %c0_38 = arith.constant 0 : index
    %c0_39 = arith.constant 0 : index
    %57 = vector.load %arg2[%56, %c0_38, %c0_39] : memref<8x32x32xf32, #tpu.memory_space<vmem>>, vector<1x32x32xf32>
    %58 = vector.shape_cast %57 : vector<1x32x32xf32> to vector<32x32xf32>
    %cst_40 = arith.constant dense<0.000000e+00> : vector<32x32xf32>
    %59 = tpu.matmul %0, %58, %cst_40 {dimension_numbers = #tpu.dot_dimension_numbers<[1], [0], [0], [1], [0, 0, 1, 1], [], []>} : vector<32x32xf32>, vector<32x32xf32>, vector<32x32xf32> -> vector<32x32xf32>
    %cst_41 = arith.constant dense<0.000000e+00> : vector<32x32xf32>
    %60 = tpu.matmul %59, %1, %cst_41 {dimension_numbers = #tpu.dot_dimension_numbers<[1], [0], [0], [1], [0, 0, 1, 1], [], []>} : vector<32x32xf32>, vector<32x32xf32>, vector<32x32xf32> -> vector<32x32xf32>
    %61 = arith.index_cast %c6_i32 : i32 to index
    %c0_42 = arith.constant 0 : index
    %c0_43 = arith.constant 0 : index
    %62 = vector.load %arg5[%61, %c0_42, %c0_43] : memref<8x32x32xf32, #tpu.memory_space<vmem>>, vector<1x32x32xf32>
    %63 = vector.shape_cast %62 : vector<1x32x32xf32> to vector<32x32xf32>
    %64 = vector.shape_cast %60 : vector<32x32xf32> to vector<1x32x32xf32>
    tpu.vector_store %arg5[%61, %c0_42, %c0_43], %64 {strides = array<i32>} : memref<8x32x32xf32, #tpu.memory_space<vmem>>, vector<1x32x32xf32>,
    %c7_i32 = arith.constant 7 : i32
    %65 = arith.index_cast %c7_i32 : i32 to index
    %c0_44 = arith.constant 0 : index
    %c0_45 = arith.constant 0 : index
    %66 = vector.load %arg2[%65, %c0_44, %c0_45] : memref<8x32x32xf32, #tpu.memory_space<vmem>>, vector<1x32x32xf32>
    %67 = vector.shape_cast %66 : vector<1x32x32xf32> to vector<32x32xf32>
    %cst_46 = arith.constant dense<0.000000e+00> : vector<32x32xf32>
    %68 = tpu.matmul %0, %67, %cst_46 {dimension_numbers = #tpu.dot_dimension_numbers<[1], [0], [0], [1], [0, 0, 1, 1], [], []>} : vector<32x32xf32>, vector<32x32xf32>, vector<32x32xf32> -> vector<32x32xf32>
    %cst_47 = arith.constant dense<0.000000e+00> : vector<32x32xf32>
    %69 = tpu.matmul %68, %1, %cst_47 {dimension_numbers = #tpu.dot_dimension_numbers<[1], [0], [0], [1], [0, 0, 1, 1], [], []>} : vector<32x32xf32>, vector<32x32xf32>, vector<32x32xf32> -> vector<32x32xf32>
    %70 = arith.index_cast %c7_i32 : i32 to index
    %c0_48 = arith.constant 0 : index
    %c0_49 = arith.constant 0 : index
    %71 = vector.load %arg5[%70, %c0_48, %c0_49] : memref<8x32x32xf32, #tpu.memory_space<vmem>>, vector<1x32x32xf32>
    %72 = vector.shape_cast %71 : vector<1x32x32xf32> to vector<32x32xf32>
    %73 = vector.shape_cast %69 : vector<32x32xf32> to vector<1x32x32xf32>
    tpu.vector_store %arg5[%70, %c0_48, %c0_49], %73 {strides = array<i32>} : memref<8x32x32xf32, #tpu.memory_space<vmem>>, vector<1x32x32xf32>,
    %c8_i32 = arith.constant 8 : i32
    return
  }
  func.func @transform_0(%arg0: i32, %arg1: i32) -> (i32, i32, i32) {
    %c0_i32 = arith.constant 0 : i32
    %c0_i32_0 = arith.constant 0 : i32
    %c0_i32_1 = arith.constant 0 : i32
    return %arg0, %c0_i32, %c0_i32_0 : i32, i32, i32
  }
  func.func @transform_1(%arg0: i32, %arg1: i32) -> (i32, i32) {
    %c0_i32 = arith.constant 0 : i32
    %c0_i32_0 = arith.constant 0 : i32
    return %arg1, %c0_i32 : i32, i32
  }
  func.func @transform_2(%arg0: i32, %arg1: i32) -> (i32, i32) {
    %c0_i32 = arith.constant 0 : i32
    %c0_i32_0 = arith.constant 0 : i32
    %c0_i32_1 = arith.constant 0 : i32
    return %c0_i32, %c0_i32_0 : i32, i32
  }
  func.func @transform_3(%arg0: i32, %arg1: i32) -> (i32, i32, i32) {
    %c0_i32 = arith.constant 0 : i32
    %c0_i32_0 = arith.constant 0 : i32
    return %arg0, %arg1, %c0_i32 : i32, i32, i32
  }
}

</mosaic_0001>

<llo_original>
// kernel: _lambda_.1
$region0: #{_lambda_.1}
  #allocation0 [shape = 'u32[]', space=smem, size = 0x4, offset = 0x4, fixed_abs, tag = 'smem constant byte address 0x4 - core index']
  #allocation1 [shape = 'u32[72,128]{1,0:T(1,128)}', space=vmem, size = 0x9000, scoped, tag = 'internal scratch']
  %s0 = inlined_call_operand.vmem [shape: f32[8,32,32], index: 0, kind: input, shape index: {}]
  %s1 = inlined_call_operand.vmem [shape: f32[32,32], index: 1, kind: input, shape index: {}]
  %s2 = inlined_call_operand.vmem [shape: f32[32,32], index: 2, kind: input, shape index: {}]
  %s3 = inlined_call_operand.hbm [shape: f32[8,32,32], index: 3, kind: output, shape index: {}]
  %s4 = sld [smem:[#allocation0]]
  $region22: #{_lambda_.1} parent=0
    _
  %s6 = ssub.s32 1, %s4
  %s7 = scalar_select 0, %s6, %s4
  $region1: #{_lambda_.1} parent=0
    #allocation2 [shape = 'u8[131072]{0}', space=vmem, size = 0x20000, scoped, tag = 'output window, operand 0, single buffered']
    #allocation3 [shape = 's32[1]{0}', space=sflag, size = 0x4, scoped, tag = 'scoped memory for _lambda_.1']
    %8 = vsyncpa [#allocation3], 0
    // Predicated region
    $region2: #{_lambda_.1} parent=1 // pred_check
      _
    $region3: #{_lambda_.1} parent=1 // pred_check_branch
      %10 = sbr.rel (0) target = $region5
    $region4: #{_lambda_.1} parent=1 // pred_region
      _
    $region5: #{_lambda_.1} parent=1 // pred_fallthru
      _
    // Predicated region
    $region6: #{_lambda_.1} parent=1 // pred_check
      _
    $region7: #{_lambda_.1} parent=1 // pred_check_branch
      %12 = sbr.rel (0) target = $region9
    $region8: #{_lambda_.1} parent=1 // pred_region
      _
    $region9: #{_lambda_.1} parent=1 // pred_fallthru
      _
    // Predicated region
    $region10: #{_lambda_.1} parent=1 // pred_check
      _
    $region11: #{_lambda_.1} parent=1 // pred_check_branch
      %14 = sbr.rel (0) target = $region13
    $region12: #{_lambda_.1} parent=1 // pred_region
      _
    $region13: #{_lambda_.1} parent=1 // pred_fallthru
      _
    %v15 = vld [vmem:[%s1] sm:$0xff]
    %v16 = vld [vmem:[%s1 + $0x8] sm:$0xff]
    %v17 = vld [vmem:[%s1 + $0x10] sm:$0xff]
    %v18 = vld [vmem:[%s1 + $0x18] sm:$0xff]
    %v19 = vld [vmem:[%s2] sm:$0xff]
    %v20 = vld [vmem:[%s2 + $0x8] sm:$0xff]
    %v21 = vld [vmem:[%s2 + $0x10] sm:$0xff]
    %v22 = vld [vmem:[%s2 + $0x18] sm:$0xff]
    %v23 = vld [vmem:[%s0] sm:$0xff]
    %v24 = vld [vmem:[%s0 + $0x8] sm:$0xff]
    %v25 = vld [vmem:[%s0 + $0x10] sm:$0xff]
    %v26 = vld [vmem:[%s0 + $0x18] sm:$0xff]
    %vm27 = vcmask 261120
    %v29 = vsel %vm27, %v15, 0
    %v32 = vsel %vm27, %v16, 0
    %v35 = vsel %vm27, %v17, 0
    %v38 = vsel %vm27, %v18, 0
    %40 = vmatpush.msra.mxu0 0.0
    %41 = vmatpush.msra.mxu0 0.0
    %42 = vmatpush.msra.mxu0 0.0
    %43 = vmatpush.msra.mxu0 0.0
    %44 = vmatpush.msra.mxu0 0.0
    %45 = vmatpush.msra.mxu0 0.0
    %46 = vmatpush.msra.mxu0 0.0
    %47 = vmatpush.msra.mxu0 0.0
    %48 = vmatpush.msra.mxu0 0.0
    %49 = vmatpush.msra.mxu0 0.0
    %50 = vmatpush.msra.mxu0 0.0
    %51 = vmatpush.msra.mxu0 0.0
    %52 = vmatpush.msra.mxu0 %v26
    %53 = vmatpush.msra.mxu0 %v25
    %54 = vmatpush.msra.mxu0 %v24
    %55 = vmatpush.msra.mxu0 %v23
    %56 = vmatmul.f32.gmra.mxu0 %v29
    %v57 = vpop.f32.mrf.mxu0
    %v58 = vadd.f32 0.0, %v57
    %59 = vmatmul.f32.gmra.mxu0 %v32
    %v60 = vpop.f32.mrf.mxu0
    %v61 = vadd.f32 0.0, %v60
    %62 = vmatmul.f32.gmra.mxu0 %v35
    %v63 = vpop.f32.mrf.mxu0
    %v64 = vadd.f32 0.0, %v63
    %65 = vmatmul.f32.gmra.mxu0 %v38
    %v66 = vpop.f32.mrf.mxu0
    %v67 = vadd.f32 0.0, %v66
    %68 = vdwg.mxu0
    %v70 = vsel %vm27, %v58, 0
    %v73 = vsel %vm27, %v61, 0
    %v76 = vsel %vm27, %v64, 0
    %v79 = vsel %vm27, %v67, 0
    %81 = vmatpush.msra.mxu0 0.0
    %82 = vmatpush.msra.mxu0 0.0
    %83 = vmatpush.msra.mxu0 0.0
    %84 = vmatpush.msra.mxu0 0.0
    %85 = vmatpush.msra.mxu0 0.0
    %86 = vmatpush.msra.mxu0 0.0
    %87 = vmatpush.msra.mxu0 0.0
    %88 = vmatpush.msra.mxu0 0.0
    %89 = vmatpush.msra.mxu0 0.0
    %90 = vmatpush.msra.mxu0 0.0
    %91 = vmatpush.msra.mxu0 0.0
    %92 = vmatpush.msra.mxu0 0.0
    %93 = vmatpush.msra.mxu0 %v22
    %94 = vmatpush.msra.mxu0 %v21
    %95 = vmatpush.msra.mxu0 %v20
    %96 = vmatpush.msra.mxu0 %v19
    %97 = vmatmul.f32.gmra.mxu0 %v70
    %v98 = vpop.f32.mrf.mxu0
    %v99 = vadd.f32 0.0, %v98
    %100 = vmatmul.f32.gmra.mxu0 %v73
    %v101 = vpop.f32.mrf.mxu0
    %v102 = vadd.f32 0.0, %v101
    %103 = vmatmul.f32.gmra.mxu0 %v76
    %v104 = vpop.f32.mrf.mxu0
    %v105 = vadd.f32 0.0, %v104
    %106 = vmatmul.f32.gmra.mxu0 %v79
    %v107 = vpop.f32.mrf.mxu0
    %v108 = vadd.f32 0.0, %v107
    %109 = vdwg.mxu0
    %110 = vst.msk [vmem:[#allocation2] sm:$0xff] %vm27, %v99
    %111 = vst.msk [vmem:[#allocation2 + $0x8] sm:$0xff] %vm27, %v102
    %112 = vst.msk [vmem:[#allocation2 + $0x10] sm:$0xff] %vm27, %v105
    %113 = vst.msk [vmem:[#allocation2 + $0x18] sm:$0xff] %vm27, %v108
    %s114 = scalar_lea.vmem %s0, 32
    %v115 = vld [vmem:[%s114] sm:$0xff]
    %v116 = vld [vmem:[%s114 + $0x8] sm:$0xff]
    %v117 = vld [vmem:[%s114 + $0x10] sm:$0xff]
    %v118 = vld [vmem:[%s114 + $0x18] sm:$0xff]
    %119 = vmatpush.msra.mxu0 0.0
    %120 = vmatpush.msra.mxu0 0.0
    %121 = vmatpush.msra.mxu0 0.0
    %122 = vmatpush.msra.mxu0 0.0
    %123 = vmatpush.msra.mxu0 0.0
    %124 = vmatpush.msra.mxu0 0.0
    %125 = vmatpush.msra.mxu0 0.0
    %126 = vmatpush.msra.mxu0 0.0
    %127 = vmatpush.msra.mxu0 0.0
    %128 = vmatpush.msra.mxu0 0.0
    %129 = vmatpush.msra.mxu0 0.0
    %130 = vmatpush.msra.mxu0 0.0
    %131 = vmatpush.msra.mxu0 %v118
    %132 = vmatpush.msra.mxu0 %v117
    %133 = vmatpush.msra.mxu0 %v116
    %134 = vmatpush.msra.mxu0 %v115
    %135 = vmatmul.f32.gmra.mxu0 %v29
    %v136 = vpop.f32.mrf.mxu0
    %v137 = vadd.f32 0.0, %v136
    %138 = vmatmul.f32.gmra.mxu0 %v32
    %v139 = vpop.f32.mrf.mxu0
    %v140 = vadd.f32 0.0, %v139
    %141 = vmatmul.f32.gmra.mxu0 %v35
    %v142 = vpop.f32.mrf.mxu0
    %v143 = vadd.f32 0.0, %v142
    %144 = vmatmul.f32.gmra.mxu0 %v38
    %v145 = vpop.f32.mrf.mxu0
    %v146 = vadd.f32 0.0, %v145
    %147 = vdwg.mxu0
    %v149 = vsel %vm27, %v137, 0
    %v152 = vsel %vm27, %v140, 0
    %v155 = vsel %vm27, %v143, 0
    %v158 = vsel %vm27, %v146, 0
    %160 = vmatpush.msra.mxu0 0.0
    %161 = vmatpush.msra.mxu0 0.0
    %162 = vmatpush.msra.mxu0 0.0
    %163 = vmatpush.msra.mxu0 0.0
    %164 = vmatpush.msra.mxu0 0.0
    %165 = vmatpush.msra.mxu0 0.0
    %166 = vmatpush.msra.mxu0 0.0
    %167 = vmatpush.msra.mxu0 0.0
    %168 = vmatpush.msra.mxu0 0.0
    %169 = vmatpush.msra.mxu0 0.0
    %170 = vmatpush.msra.mxu0 0.0
    %171 = vmatpush.msra.mxu0 0.0
    %172 = vmatpush.msra.mxu0 %v22
    %173 = vmatpush.msra.mxu0 %v21
    %174 = vmatpush.msra.mxu0 %v20
    %175 = vmatpush.msra.mxu0 %v19
    %176 = vmatmul.f32.gmra.mxu0 %v149
    %v177 = vpop.f32.mrf.mxu0
    %v178 = vadd.f32 0.0, %v177
    %179 = vmatmul.f32.gmra.mxu0 %v152
    %v180 = vpop.f32.mrf.mxu0
    %v181 = vadd.f32 0.0, %v180
    %182 = vmatmul.f32.gmra.mxu0 %v155
    %v183 = vpop.f32.mrf.mxu0
    %v184 = vadd.f32 0.0, %v183
    %185 = vmatmul.f32.gmra.mxu0 %v158
    %v186 = vpop.f32.mrf.mxu0
    %v187 = vadd.f32 0.0, %v186
    %188 = vdwg.mxu0
    %s189 = scalar_lea.vmem [#allocation2], 32
    %190 = vst.msk [vmem:[%s189] sm:$0xff] %vm27, %v178
    %191 = vst.msk [vmem:[%s189 + $0x8] sm:$0xff] %vm27, %v181
    %192 = vst.msk [vmem:[%s189 + $0x10] sm:$0xff] %vm27, %v184
    %193 = vst.msk [vmem:[%s189 + $0x18] sm:$0xff] %vm27, %v187
    %s194 = scalar_lea.vmem %s0, 64
    %v195 = vld [vmem:[%s194] sm:$0xff]
    %v196 = vld [vmem:[%s194 + $0x8] sm:$0xff]
    %v197 = vld [vmem:[%s194 + $0x10] sm:$0xff]
    %v198 = vld [vmem:[%s194 + $0x18] sm:$0xff]
    %199 = vmatpush.msra.mxu0 0.0
    %200 = vmatpush.msra.mxu0 0.0
    %201 = vmatpush.msra.mxu0 0.0
    %202 = vmatpush.msra.mxu0 0.0
    %203 = vmatpush.msra.mxu0 0.0
    %204 = vmatpush.msra.mxu0 0.0
    %205 = vmatpush.msra.mxu0 0.0
    %206 = vmatpush.msra.mxu0 0.0
    %207 = vmatpush.msra.mxu0 0.0
    %208 = vmatpush.msra.mxu0 0.0
    %209 = vmatpush.msra.mxu0 0.0
    %210 = vmatpush.msra.mxu0 0.0
    %211 = vmatpush.msra.mxu0 %v198
    %212 = vmatpush.msra.mxu0 %v197
    %213 = vmatpush.msra.mxu0 %v196
    %214 = vmatpush.msra.mxu0 %v195
    %215 = vmatmul.f32.gmra.mxu0 %v29
    %v216 = vpop.f32.mrf.mxu0
    %v217 = vadd.f32 0.0, %v216
    %218 = vmatmul.f32.gmra.mxu0 %v32
    %v219 = vpop.f32.mrf.mxu0
    %v220 = vadd.f32 0.0, %v219
    %221 = vmatmul.f32.gmra.mxu0 %v35
    %v222 = vpop.f32.mrf.mxu0
    %v223 = vadd.f32 0.0, %v222
    %224 = vmatmul.f32.gmra.mxu0 %v38
    %v225 = vpop.f32.mrf.mxu0
    %v226 = vadd.f32 0.0, %v225
    %227 = vdwg.mxu0
    %v229 = vsel %vm27, %v217, 0
    %v232 = vsel %vm27, %v220, 0
    %v235 = vsel %vm27, %v223, 0
    %v238 = vsel %vm27, %v226, 0
    %240 = vmatpush.msra.mxu0 0.0
    %241 = vmatpush.msra.mxu0 0.0
    %242 = vmatpush.msra.mxu0 0.0
    %243 = vmatpush.msra.mxu0 0.0
    %244 = vmatpush.msra.mxu0 0.0
    %245 = vmatpush.msra.mxu0 0.0
    %246 = vmatpush.msra.mxu0 0.0
    %247 = vmatpush.msra.mxu0 0.0
    %248 = vmatpush.msra.mxu0 0.0
    %249 = vmatpush.msra.mxu0 0.0
    %250 = vmatpush.msra.mxu0 0.0
    %251 = vmatpush.msra.mxu0 0.0
    %252 = vmatpush.msra.mxu0 %v22
    %253 = vmatpush.msra.mxu0 %v21
    %254 = vmatpush.msra.mxu0 %v20
    %255 = vmatpush.msra.mxu0 %v19
    %256 = vmatmul.f32.gmra.mxu0 %v229
    %v257 = vpop.f32.mrf.mxu0
    %v258 = vadd.f32 0.0, %v257
    %259 = vmatmul.f32.gmra.mxu0 %v232
    %v260 = vpop.f32.mrf.mxu0
    %v261 = vadd.f32 0.0, %v260
    %262 = vmatmul.f32.gmra.mxu0 %v235
    %v263 = vpop.f32.mrf.mxu0
    %v264 = vadd.f32 0.0, %v263
    %265 = vmatmul.f32.gmra.mxu0 %v238
    %v266 = vpop.f32.mrf.mxu0
    %v267 = vadd.f32 0.0, %v266
    %268 = vdwg.mxu0
    %s269 = scalar_lea.vmem [#allocation2], 64
    %270 = vst.msk [vmem:[%s269] sm:$0xff] %vm27, %v258
    %271 = vst.msk [vmem:[%s269 + $0x8] sm:$0xff] %vm27, %v261
    %272 = vst.msk [vmem:[%s269 + $0x10] sm:$0xff] %vm27, %v264
    %273 = vst.msk [vmem:[%s269 + $0x18] sm:$0xff] %vm27, %v267
    %s274 = scalar_lea.vmem %s0, 96
    %v275 = vld [vmem:[%s274] sm:$0xff]
    %v276 = vld [vmem:[%s274 + $0x8] sm:$0xff]
    %v277 = vld [vmem:[%s274 + $0x10] sm:$0xff]
    %v278 = vld [vmem:[%s274 + $0x18] sm:$0xff]
    %279 = vmatpush.msra.mxu0 0.0
    %280 = vmatpush.msra.mxu0 0.0
    %281 = vmatpush.msra.mxu0 0.0
    %282 = vmatpush.msra.mxu0 0.0
    %283 = vmatpush.msra.mxu0 0.0
    %284 = vmatpush.msra.mxu0 0.0
    %285 = vmatpush.msra.mxu0 0.0
    %286 = vmatpush.msra.mxu0 0.0
    %287 = vmatpush.msra.mxu0 0.0
    %288 = vmatpush.msra.mxu0 0.0
    %289 = vmatpush.msra.mxu0 0.0
    %290 = vmatpush.msra.mxu0 0.0
    %291 = vmatpush.msra.mxu0 %v278
    %292 = vmatpush.msra.mxu0 %v277
    %293 = vmatpush.msra.mxu0 %v276
    %294 = vmatpush.msra.mxu0 %v275
    %295 = vmatmul.f32.gmra.mxu0 %v29
    %v296 = vpop.f32.mrf.mxu0
    %v297 = vadd.f32 0.0, %v296
    %298 = vmatmul.f32.gmra.mxu0 %v32
    %v299 = vpop.f32.mrf.mxu0
    %v300 = vadd.f32 0.0, %v299
    %301 = vmatmul.f32.gmra.mxu0 %v35
    %v302 = vpop.f32.mrf.mxu0
    %v303 = vadd.f32 0.0, %v302
    %304 = vmatmul.f32.gmra.mxu0 %v38
    %v305 = vpop.f32.mrf.mxu0
    %v306 = vadd.f32 0.0, %v305
    %307 = vdwg.mxu0
    %v309 = vsel %vm27, %v297, 0
    %v312 = vsel %vm27, %v300, 0
    %v315 = vsel %vm27, %v303, 0
    %v318 = vsel %vm27, %v306, 0
    %320 = vmatpush.msra.mxu0 0.0
    %321 = vmatpush.msra.mxu0 0.0
    %322 = vmatpush.msra.mxu0 0.0
    %323 = vmatpush.msra.mxu0 0.0
    %324 = vmatpush.msra.mxu0 0.0
    %325 = vmatpush.msra.mxu0 0.0
    %326 = vmatpush.msra.mxu0 0.0
    %327 = vmatpush.msra.mxu0 0.0
    %328 = vmatpush.msra.mxu0 0.0
    %329 = vmatpush.msra.mxu0 0.0
    %330 = vmatpush.msra.mxu0 0.0
    %331 = vmatpush.msra.mxu0 0.0
    %332 = vmatpush.msra.mxu0 %v22
    %333 = vmatpush.msra.mxu0 %v21
    %334 = vmatpush.msra.mxu0 %v20
    %335 = vmatpush.msra.mxu0 %v19
    %336 = vmatmul.f32.gmra.mxu0 %v309
    %v337 = vpop.f32.mrf.mxu0
    %v338 = vadd.f32 0.0, %v337
    %339 = vmatmul.f32.gmra.mxu0 %v312
    %v340 = vpop.f32.mrf.mxu0
    %v341 = vadd.f32 0.0, %v340
    %342 = vmatmul.f32.gmra.mxu0 %v315
    %v343 = vpop.f32.mrf.mxu0
    %v344 = vadd.f32 0.0, %v343
    %345 = vmatmul.f32.gmra.mxu0 %v318
    %v346 = vpop.f32.mrf.mxu0
    %v347 = vadd.f32 0.0, %v346
    %348 = vdwg.mxu0
    %s349 = scalar_lea.vmem [#allocation2], 96
    %350 = vst.msk [vmem:[%s349] sm:$0xff] %vm27, %v338
    %351 = vst.msk [vmem:[%s349 + $0x8] sm:$0xff] %vm27, %v341
    %352 = vst.msk [vmem:[%s349 + $0x10] sm:$0xff] %vm27, %v344
    %353 = vst.msk [vmem:[%s349 + $0x18] sm:$0xff] %vm27, %v347
    %s354 = scalar_lea.vmem %s0, 128
    %v355 = vld [vmem:[%s354] sm:$0xff]
    %v356 = vld [vmem:[%s354 + $0x8] sm:$0xff]
    %v357 = vld [vmem:[%s354 + $0x10] sm:$0xff]
    %v358 = vld [vmem:[%s354 + $0x18] sm:$0xff]
    %359 = vmatpush.msra.mxu0 0.0
    %360 = vmatpush.msra.mxu0 0.0
    %361 = vmatpush.msra.mxu0 0.0
    %362 = vmatpush.msra.mxu0 0.0
    %363 = vmatpush.msra.mxu0 0.0
    %364 = vmatpush.msra.mxu0 0.0
    %365 = vmatpush.msra.mxu0 0.0
    %366 = vmatpush.msra.mxu0 0.0
    %367 = vmatpush.msra.mxu0 0.0
    %368 = vmatpush.msra.mxu0 0.0
    %369 = vmatpush.msra.mxu0 0.0
    %370 = vmatpush.msra.mxu0 0.0
    %371 = vmatpush.msra.mxu0 %v358
    %372 = vmatpush.msra.mxu0 %v357
    %373 = vmatpush.msra.mxu0 %v356
    %374 = vmatpush.msra.mxu0 %v355
    %375 = vmatmul.f32.gmra.mxu0 %v29
    %v376 = vpop.f32.mrf.mxu0
    %v377 = vadd.f32 0.0, %v376
    %378 = vmatmul.f32.gmra.mxu0 %v32
    %v379 = vpop.f32.mrf.mxu0
    %v380 = vadd.f32 0.0, %v379
    %381 = vmatmul.f32.gmra.mxu0 %v35
    %v382 = vpop.f32.mrf.mxu0
    %v383 = vadd.f32 0.0, %v382
    %384 = vmatmul.f32.gmra.mxu0 %v38
    %v385 = vpop.f32.mrf.mxu0
    %v386 = vadd.f32 0.0, %v385
    %387 = vdwg.mxu0
    %v389 = vsel %vm27, %v377, 0
    %v392 = vsel %vm27, %v380, 0
    %v395 = vsel %vm27, %v383, 0
    %v398 = vsel %vm27, %v386, 0
    %400 = vmatpush.msra.mxu0 0.0
    %401 = vmatpush.msra.mxu0 0.0
    %402 = vmatpush.msra.mxu0 0.0
    %403 = vmatpush.msra.mxu0 0.0
    %404 = vmatpush.msra.mxu0 0.0
    %405 = vmatpush.msra.mxu0 0.0
    %406 = vmatpush.msra.mxu0 0.0
    %407 = vmatpush.msra.mxu0 0.0
    %408 = vmatpush.msra.mxu0 0.0
    %409 = vmatpush.msra.mxu0 0.0
    %410 = vmatpush.msra.mxu0 0.0
    %411 = vmatpush.msra.mxu0 0.0
    %412 = vmatpush.msra.mxu0 %v22
    %413 = vmatpush.msra.mxu0 %v21
    %414 = vmatpush.msra.mxu0 %v20
    %415 = vmatpush.msra.mxu0 %v19
    %416 = vmatmul.f32.gmra.mxu0 %v389
    %v417 = vpop.f32.mrf.mxu0
    %v418 = vadd.f32 0.0, %v417
    %419 = vmatmul.f32.gmra.mxu0 %v392
    %v420 = vpop.f32.mrf.mxu0
    %v421 = vadd.f32 0.0, %v420
    %422 = vmatmul.f32.gmra.mxu0 %v395
    %v423 = vpop.f32.mrf.mxu0
    %v424 = vadd.f32 0.0, %v423
    %425 = vmatmul.f32.gmra.mxu0 %v398
    %v426 = vpop.f32.mrf.mxu0
    %v427 = vadd.f32 0.0, %v426
    %428 = vdwg.mxu0
    %s429 = scalar_lea.vmem [#allocation2], 128
    %430 = vst.msk [vmem:[%s429] sm:$0xff] %vm27, %v418
    %431 = vst.msk [vmem:[%s429 + $0x8] sm:$0xff] %vm27, %v421
    %432 = vst.msk [vmem:[%s429 + $0x10] sm:$0xff] %vm27, %v424
    %433 = vst.msk [vmem:[%s429 + $0x18] sm:$0xff] %vm27, %v427
    %s434 = scalar_lea.vmem %s0, 160
    %v435 = vld [vmem:[%s434] sm:$0xff]
    %v436 = vld [vmem:[%s434 + $0x8] sm:$0xff]
    %v437 = vld [vmem:[%s434 + $0x10] sm:$0xff]
    %v438 = vld [vmem:[%s434 + $0x18] sm:$0xff]
    %439 = vmatpush.msra.mxu0 0.0
    %440 = vmatpush.msra.mxu0 0.0
    %441 = vmatpush.msra.mxu0 0.0
    %442 = vmatpush.msra.mxu0 0.0
    %443 = vmatpush.msra.mxu0 0.0
    %444 = vmatpush.msra.mxu0 0.0
    %445 = vmatpush.msra.mxu0 0.0
    %446 = vmatpush.msra.mxu0 0.0
    %447 = vmatpush.msra.mxu0 0.0
    %448 = vmatpush.msra.mxu0 0.0
    %449 = vmatpush.msra.mxu0 0.0
    %450 = vmatpush.msra.mxu0 0.0
    %451 = vmatpush.msra.mxu0 %v438
    %452 = vmatpush.msra.mxu0 %v437
    %453 = vmatpush.msra.mxu0 %v436
    %454 = vmatpush.msra.mxu0 %v435
    %455 = vmatmul.f32.gmra.mxu0 %v29
    %v456 = vpop.f32.mrf.mxu0
    %v457 = vadd.f32 0.0, %v456
    %458 = vmatmul.f32.gmra.mxu0 %v32
    %v459 = vpop.f32.mrf.mxu0
    %v460 = vadd.f32 0.0, %v459
    %461 = vmatmul.f32.gmra.mxu0 %v35
    %v462 = vpop.f32.mrf.mxu0
    %v463 = vadd.f32 0.0, %v462
    %464 = vmatmul.f32.gmra.mxu0 %v38
    %v465 = vpop.f32.mrf.mxu0
    %v466 = vadd.f32 0.0, %v465
    %467 = vdwg.mxu0
    %v469 = vsel %vm27, %v457, 0
    %v472 = vsel %vm27, %v460, 0
    %v475 = vsel %vm27, %v463, 0
    %v478 = vsel %vm27, %v466, 0
    %480 = vmatpush.msra.mxu0 0.0
    %481 = vmatpush.msra.mxu0 0.0
    %482 = vmatpush.msra.mxu0 0.0
    %483 = vmatpush.msra.mxu0 0.0
    %484 = vmatpush.msra.mxu0 0.0
    %485 = vmatpush.msra.mxu0 0.0
    %486 = vmatpush.msra.mxu0 0.0
    %487 = vmatpush.msra.mxu0 0.0
    %488 = vmatpush.msra.mxu0 0.0
    %489 = vmatpush.msra.mxu0 0.0
    %490 = vmatpush.msra.mxu0 0.0
    %491 = vmatpush.msra.mxu0 0.0
    %492 = vmatpush.msra.mxu0 %v22
    %493 = vmatpush.msra.mxu0 %v21
    %494 = vmatpush.msra.mxu0 %v20
    %495 = vmatpush.msra.mxu0 %v19
    %496 = vmatmul.f32.gmra.mxu0 %v469
    %v497 = vpop.f32.mrf.mxu0
    %v498 = vadd.f32 0.0, %v497
    %499 = vmatmul.f32.gmra.mxu0 %v472
    %v500 = vpop.f32.mrf.mxu0
    %v501 = vadd.f32 0.0, %v500
    %502 = vmatmul.f32.gmra.mxu0 %v475
    %v503 = vpop.f32.mrf.mxu0
    %v504 = vadd.f32 0.0, %v503
    %505 = vmatmul.f32.gmra.mxu0 %v478
    %v506 = vpop.f32.mrf.mxu0
    %v507 = vadd.f32 0.0, %v506
    %508 = vdwg.mxu0
    %s509 = scalar_lea.vmem [#allocation2], 160
    %510 = vst.msk [vmem:[%s509] sm:$0xff] %vm27, %v498
    %511 = vst.msk [vmem:[%s509 + $0x8] sm:$0xff] %vm27, %v501
    %512 = vst.msk [vmem:[%s509 + $0x10] sm:$0xff] %vm27, %v504
    %513 = vst.msk [vmem:[%s509 + $0x18] sm:$0xff] %vm27, %v507
    %s514 = scalar_lea.vmem %s0, 192
    %v515 = vld [vmem:[%s514] sm:$0xff]
    %v516 = vld [vmem:[%s514 + $0x8] sm:$0xff]
    %v517 = vld [vmem:[%s514 + $0x10] sm:$0xff]
    %v518 = vld [vmem:[%s514 + $0x18] sm:$0xff]
    %519 = vmatpush.msra.mxu0 0.0
    %520 = vmatpush.msra.mxu0 0.0
    %521 = vmatpush.msra.mxu0 0.0
    %522 = vmatpush.msra.mxu0 0.0
    %523 = vmatpush.msra.mxu0 0.0
    %524 = vmatpush.msra.mxu0 0.0
    %525 = vmatpush.msra.mxu0 0.0
    %526 = vmatpush.msra.mxu0 0.0
    %527 = vmatpush.msra.mxu0 0.0
    %528 = vmatpush.msra.mxu0 0.0
    %529 = vmatpush.msra.mxu0 0.0
    %530 = vmatpush.msra.mxu0 0.0
    %531 = vmatpush.msra.mxu0 %v518
    %532 = vmatpush.msra.mxu0 %v517
    %533 = vmatpush.msra.mxu0 %v516
    %534 = vmatpush.msra.mxu0 %v515
    %535 = vmatmul.f32.gmra.mxu0 %v29
    %v536 = vpop.f32.mrf.mxu0
    %v537 = vadd.f32 0.0, %v536
    %538 = vmatmul.f32.gmra.mxu0 %v32
    %v539 = vpop.f32.mrf.mxu0
    %v540 = vadd.f32 0.0, %v539
    %541 = vmatmul.f32.gmra.mxu0 %v35
    %v542 = vpop.f32.mrf.mxu0
    %v543 = vadd.f32 0.0, %v542
    %544 = vmatmul.f32.gmra.mxu0 %v38
    %v545 = vpop.f32.mrf.mxu0
    %v546 = vadd.f32 0.0, %v545
    %547 = vdwg.mxu0
    %v549 = vsel %vm27, %v537, 0
    %v552 = vsel %vm27, %v540, 0
    %v555 = vsel %vm27, %v543, 0
    %v558 = vsel %vm27, %v546, 0
    %560 = vmatpush.msra.mxu0 0.0
    %561 = vmatpush.msra.mxu0 0.0
    %562 = vmatpush.msra.mxu0 0.0
    %563 = vmatpush.msra.mxu0 0.0
    %564 = vmatpush.msra.mxu0 0.0
    %565 = vmatpush.msra.mxu0 0.0
    %566 = vmatpush.msra.mxu0 0.0
    %567 = vmatpush.msra.mxu0 0.0
    %568 = vmatpush.msra.mxu0 0.0
    %569 = vmatpush.msra.mxu0 0.0
    %570 = vmatpush.msra.mxu0 0.0
    %571 = vmatpush.msra.mxu0 0.0
    %572 = vmatpush.msra.mxu0 %v22
    %573 = vmatpush.msra.mxu0 %v21
    %574 = vmatpush.msra.mxu0 %v20
    %575 = vmatpush.msra.mxu0 %v19
    %576 = vmatmul.f32.gmra.mxu0 %v549
    %v577 = vpop.f32.mrf.mxu0
    %v578 = vadd.f32 0.0, %v577
    %579 = vmatmul.f32.gmra.mxu0 %v552
    %v580 = vpop.f32.mrf.mxu0
    %v581 = vadd.f32 0.0, %v580
    %582 = vmatmul.f32.gmra.mxu0 %v555
    %v583 = vpop.f32.mrf.mxu0
    %v584 = vadd.f32 0.0, %v583
    %585 = vmatmul.f32.gmra.mxu0 %v558
    %v586 = vpop.f32.mrf.mxu0
    %v587 = vadd.f32 0.0, %v586
    %588 = vdwg.mxu0
    %s589 = scalar_lea.vmem [#allocation2], 192
    %590 = vst.msk [vmem:[%s589] sm:$0xff] %vm27, %v578
    %591 = vst.msk [vmem:[%s589 + $0x8] sm:$0xff] %vm27, %v581
    %592 = vst.msk [vmem:[%s589 + $0x10] sm:$0xff] %vm27, %v584
    %593 = vst.msk [vmem:[%s589 + $0x18] sm:$0xff] %vm27, %v587
    %s594 = scalar_lea.vmem %s0, 224
    %v595 = vld [vmem:[%s594] sm:$0xff]
    %v596 = vld [vmem:[%s594 + $0x8] sm:$0xff]
    %v597 = vld [vmem:[%s594 + $0x10] sm:$0xff]
    %v598 = vld [vmem:[%s594 + $0x18] sm:$0xff]
    %599 = vmatpush.msra.mxu0 0.0
    %600 = vmatpush.msra.mxu0 0.0
    %601 = vmatpush.msra.mxu0 0.0
    %602 = vmatpush.msra.mxu0 0.0
    %603 = vmatpush.msra.mxu0 0.0
    %604 = vmatpush.msra.mxu0 0.0
    %605 = vmatpush.msra.mxu0 0.0
    %606 = vmatpush.msra.mxu0 0.0
    %607 = vmatpush.msra.mxu0 0.0
    %608 = vmatpush.msra.mxu0 0.0
    %609 = vmatpush.msra.mxu0 0.0
    %610 = vmatpush.msra.mxu0 0.0
    %611 = vmatpush.msra.mxu0 %v598
    %612 = vmatpush.msra.mxu0 %v597
    %613 = vmatpush.msra.mxu0 %v596
    %614 = vmatpush.msra.mxu0 %v595
    %615 = vmatmul.f32.gmra.mxu0 %v29
    %v616 = vpop.f32.mrf.mxu0
    %v617 = vadd.f32 0.0, %v616
    %618 = vmatmul.f32.gmra.mxu0 %v32
    %v619 = vpop.f32.mrf.mxu0
    %v620 = vadd.f32 0.0, %v619
    %621 = vmatmul.f32.gmra.mxu0 %v35
    %v622 = vpop.f32.mrf.mxu0
    %v623 = vadd.f32 0.0, %v622
    %624 = vmatmul.f32.gmra.mxu0 %v38
    %v625 = vpop.f32.mrf.mxu0
    %v626 = vadd.f32 0.0, %v625
    %627 = vdwg.mxu0
    %v629 = vsel %vm27, %v617, 0
    %v632 = vsel %vm27, %v620, 0
    %v635 = vsel %vm27, %v623, 0
    %v638 = vsel %vm27, %v626, 0
    %640 = vmatpush.msra.mxu0 0.0
    %641 = vmatpush.msra.mxu0 0.0
    %642 = vmatpush.msra.mxu0 0.0
    %643 = vmatpush.msra.mxu0 0.0
    %644 = vmatpush.msra.mxu0 0.0
    %645 = vmatpush.msra.mxu0 0.0
    %646 = vmatpush.msra.mxu0 0.0
    %647 = vmatpush.msra.mxu0 0.0
    %648 = vmatpush.msra.mxu0 0.0
    %649 = vmatpush.msra.mxu0 0.0
    %650 = vmatpush.msra.mxu0 0.0
    %651 = vmatpush.msra.mxu0 0.0
    %652 = vmatpush.msra.mxu0 %v22
    %653 = vmatpush.msra.mxu0 %v21
    %654 = vmatpush.msra.mxu0 %v20
    %655 = vmatpush.msra.mxu0 %v19
    %656 = vmatmul.f32.gmra.mxu0 %v629
    %v657 = vpop.f32.mrf.mxu0
    %v658 = vadd.f32 0.0, %v657
    %659 = vmatmul.f32.gmra.mxu0 %v632
    %v660 = vpop.f32.mrf.mxu0
    %v661 = vadd.f32 0.0, %v660
    %662 = vmatmul.f32.gmra.mxu0 %v635
    %v663 = vpop.f32.mrf.mxu0
    %v664 = vadd.f32 0.0, %v663
    %665 = vmatmul.f32.gmra.mxu0 %v638
    %v666 = vpop.f32.mrf.mxu0
    %v667 = vadd.f32 0.0, %v666
    %668 = vdwg.mxu0
    %s669 = scalar_lea.vmem [#allocation2], 224
    %670 = vst.msk [vmem:[%s669] sm:$0xff] %vm27, %v658
    %671 = vst.msk [vmem:[%s669 + $0x8] sm:$0xff] %vm27, %v661
    %672 = vst.msk [vmem:[%s669 + $0x10] sm:$0xff] %vm27, %v664
    %673 = vst.msk [vmem:[%s669 + $0x18] sm:$0xff] %vm27, %v667
    // Predicated region
    $region14: #{_lambda_.1} parent=1 // pred_check
      _
    $region15: #{_lambda_.1} parent=1 // pred_check_branch
      %675 = sbr.rel (0) target = $region17
    $region16: #{_lambda_.1} parent=1 // pred_region
      %677 = vsyncadd [#allocation3], 0
      %s678 = sshll.u32 [#allocation2], 4
      %s679 = int_to_ptr.vmem [resolvable:$true] %s678
      %s680 = sshll.u32 %s3, 4
      %s681 = int_to_ptr.hbm [resolvable:$true] %s680
      %686 = dma.vmem_to_hbm [thread:$0]  %s679, 4096, %s681, [#allocation3], 128, 128, 8
    $region17: #{_lambda_.1} parent=1 // pred_fallthru
      _
    // Predicated region
    $region18: #{_lambda_.1} parent=1 // pred_check
      _
    $region19: #{_lambda_.1} parent=1 // pred_check_branch
      %688 = sbr.rel (0) target = $region21
    $region20: #{_lambda_.1} parent=1 // pred_region
      %690 = dma.done [#allocation3], 4096
    $region21: #{_lambda_.1} parent=1 // pred_fallthru
      _
    %691 = vsyncpa [#allocation3], 1

</llo_original>
